<compile_context>
chip_gen: v6e
topology: v6e:2x2x1
jax: 0.10.0
libtpu: 0.0.40
codegen_flags: <defaults>
</compile_context>

<pallas_src>
import jax
import jax.numpy as jnp
import numpy as np
from jax import lax
from jax.experimental import pallas as pl
from jax.experimental.pallas import tpu as pltpu


# ----------------------------- Pallas kernels ------------------------------

def _conv_relu_kernel(x_ref, w_ref, b_ref, o_ref):
    # x_ref: (K, tm) bf16   w_ref: (Cout, K) bf16   b_ref: (Cout, 1) f32
    # o_ref: (Cout, tm)
    y = jnp.dot(w_ref[...], x_ref[...], preferred_element_type=jnp.float32)
    y = jnp.maximum(y + b_ref[...], 0.0)
    o_ref[...] = y.astype(o_ref.dtype)


def _conv_relu_pool_kernel(x_ref, w_ref, b_ref, o_ref):
    # x_ref: (4*K, tm) -- 4 pooling-parity im2col blocks stacked on the
    #                     contraction axis; w_ref: (Cout, K) shared by all 4.
    # out = relu(max_p(W @ x_p) + b) == maxpool2x2(relu(conv(x) + b))
    w = w_ref[...]
    k = w.shape[1]

    def parity(p):
        return jnp.dot(w, x_ref[p * k:(p + 1) * k, :],
                       preferred_element_type=jnp.float32)

    y = jnp.maximum(jnp.maximum(parity(0), parity(1)),
                    jnp.maximum(parity(2), parity(3)))
    y = jnp.maximum(y + b_ref[...], 0.0)
    o_ref[...] = y.astype(o_ref.dtype)


# ------------------------------ pallas_call glue ----------------------------

def _round_up(a, b):
    return (a + b - 1) // b * b


def _pick_block(m, tm):
    """Lane-tile size (multiple of 128) + padded M; prefer >=2 grid steps (v7x)."""
    m128 = _round_up(m, 128)
    blk = min(_round_up(tm, 128), m128)
    if m128 >= 256:                      # keep >=2 steps for megacore sharding
        blk = min(blk, _round_up(m128 // 2, 128))
    return blk, _round_up(m, blk)


def _conv_call(x_cm, w_mat, b_col, *, parities=1, tm=512,
               out_dtype=jnp.bfloat16):
    k_tot, m = x_cm.shape
    c_out = w_mat.shape[0]
    blk, m_pad = _pick_block(m, tm)
    if m_pad != m:
        x_cm = jnp.pad(x_cm, ((0, 0), (0, m_pad - m)))

    kernel = _conv_relu_kernel if parities == 1 else _conv_relu_pool_kernel
    out = pl.pallas_call(
        kernel,
        out_shape=jax.ShapeDtypeStruct((c_out, m_pad), out_dtype),
        grid_spec=pltpu.PrefetchScalarGridSpec(
            num_scalar_prefetch=0,
            grid=(m_pad // blk,),
            in_specs=[
                pl.BlockSpec((k_tot, blk), lambda i: (0, i)),
                pl.BlockSpec((c_out, k_tot // parities), lambda i: (0, 0)),
                pl.BlockSpec((c_out, 1), lambda i: (0, 0)),
            ],
            out_specs=pl.BlockSpec((c_out, blk), lambda i: (0, i)),
        ),
        compiler_params=pltpu.CompilerParams(
            dimension_semantics=("parallel",)),
    )(x_cm, w_mat, b_col)
    return out[:, :m]


# ------------------------------- layout glue --------------------------------

def _im2col_taps(f):
    """(N, C, H, W) -> (N, 9*C, H, W); channel axis is tap-major (kh*3+kw), C-minor."""
    n, c, h, w = f.shape
    fp = jnp.pad(f, ((0, 0), (0, 0), (1, 1), (1, 1)))
    taps = [fp[:, :, kh:kh + h, kw:kw + w]
            for kh in range(3) for kw in range(3)]
    return jnp.concatenate(taps, axis=1)


def _to_cm(g):
    """(N, K, H, W) -> (K, N*H*W): channels on sublanes, pixels on lanes."""
    n, k, h, w = g.shape
    return jnp.transpose(g, (1, 0, 2, 3)).reshape(k, n * h * w)


def _from_cm(y, n, h, w):
    """(C, N*H*W) -> (N, C, H, W)."""
    c = y.shape[0]
    return jnp.transpose(y.reshape(c, n, h, w), (1, 0, 2, 3))


def _w_mat(w, dtype):
    """PyTorch (Cout, Cin, 3, 3) -> (Cout, 9*Cin), tap-major / Cin-minor
    (matches _im2col_taps ordering)."""
    return jnp.transpose(w, (0, 2, 3, 1)).reshape(w.shape[0], -1).astype(dtype)


def _b_col(b):
    return b.reshape(-1, 1).astype(jnp.float32)


def htlsnet_forward(x, params, *, tm=512, compute_dtype=jnp.bfloat16):
    """x: (N, Cin, H, W) float32 NCHW (PyTorch convention). Returns NCHW f32."""
    n, _, h, w = x.shape
    assert h % 2 == 0 and w % 2 == 0, "MaxPool2d(2,2) fusion assumes even H, W"
    h2, w2 = h // 2, w // 2

    f = x.astype(compute_dtype)

    # conv1 + ReLU  : one (C0, 9*Cin) @ (9*Cin, tm) matmul per lane tile
    y = _conv_call(_to_cm(_im2col_taps(f)),
                   _w_mat(params["w1"], compute_dtype), _b_col(params["b1"]),
                   tm=tm)
    f = _from_cm(y, n, h, w)

    # conv2 + ReLU + MaxPool2d(2,2) : 4 pooling parities fused in-kernel
    taps = _im2col_taps(f)                                    # (N, 9*C0, H, W)
    par = jnp.concatenate([taps[:, :, a::2, b::2]
                           for a in range(2) for b in range(2)], axis=1)
    y = _conv_call(_to_cm(par),
                   _w_mat(params["w2"], compute_dtype), _b_col(params["b2"]),
                   parities=4, tm=tm)
    f = _from_cm(y, n, h2, w2)

    # conv3 + ReLU
    y = _conv_call(_to_cm(_im2col_taps(f)),
                   _w_mat(params["w3"], compute_dtype), _b_col(params["b3"]),
                   tm=tm)
    f = _from_cm(y, n, h2, w2)

    # conv4 + ReLU  (final output in f32)
    # TODO(synk): on v5e, build the 9 taps in-kernel from a haloed row tile
    # (slicing / pltpu.roll) instead of glue-side im2col to remove the ~9x HBM
    # read amplification of the concatenated tap matrix.
    y = _conv_call(_to_cm(_im2col_taps(f)),
                   _w_mat(params["w4"], compute_dtype), _b_col(params["b4"]),
                   tm=tm, out_dtype=jnp.float32)
    return _from_cm(y, n, h2, w2)


# ------------------------------ reference (f32) -----------------------------

def reference_forward(x, params):
    def conv(h, w, b):
        y = lax.conv_general_dilated(
            h, w, window_strides=(1, 1), padding=[(1, 1), (1, 1)],
            dimension_numbers=("NCHW", "OIHW", "NCHW"))
        return y + b[None, :, None, None]

    h = jnp.maximum(conv(x, params["w1"], params["b1"]), 0.0)
    h = jnp.maximum(conv(h, params["w2"], params["b2"]), 0.0)
    n, c, hh, ww = h.shape
    h = h.reshape(n, c, hh // 2, 2, ww // 2, 2).max(axis=(3, 5))
    h = jnp.maximum(conv(h, params["w3"], params["b3"]), 0.0)
    h = jnp.maximum(conv(h, params["w4"], params["b4"]), 0.0)
    return h


if __name__ == "__main__":
    input_channel = 4
    channels = (8, 16, 32)            # HTLSNet(input_channel, channels)
    N, H, W = 2, 16, 16

    key = jax.random.PRNGKey(0)
    k = jax.random.split(key, 9)
    x = jax.random.normal(k[0], (N, input_channel, H, W), jnp.float32)
    params = dict(
        w1=0.1 * jax.random.normal(k[1], (channels[0], input_channel, 3, 3), jnp.float32),
        b1=0.1 * jax.random.normal(k[2], (channels[0],), jnp.float32),
        w2=0.1 * jax.random.normal(k[3], (channels[1], channels[0], 3, 3), jnp.float32),
        b2=0.1 * jax.random.normal(k[4], (channels[1],), jnp.float32),
        w3=0.1 * jax.random.normal(k[5], (channels[1], channels[1], 3, 3), jnp.float32),
        b3=0.1 * jax.random.normal(k[6], (channels[1],), jnp.float32),
        w4=0.1 * jax.random.normal(k[7], (channels[2], channels[1], 3, 3), jnp.float32),
        b4=0.1 * jax.random.normal(k[8], (channels[2],), jnp.float32),
    )

    out = jax.block_until_ready(htlsnet_forward(x, params))
    assert out.shape == (N, channels[2], H // 2, W // 2), out.shape

    ref = jax.block_until_ready(reference_forward(x, params))
    np.testing.assert_allclose(np.asarray(out), np.asarray(ref),
                               atol=2e-2, rtol=2e-2)
    print("KERNEL_OK")
</pallas_src>

<mosaic_0001>
module attributes {stable_mosaic.version = 11 : i64} {
  func.func @_conv_relu_kernel(%arg0: i32, %arg1: memref<36x256xbf16, #tpu.memory_space<vmem>>, %arg2: memref<8x36xbf16, #tpu.memory_space<vmem>>, %arg3: memref<8x1xf32, #tpu.memory_space<vmem>>, %arg4: memref<8x256xbf16, #tpu.memory_space<vmem>>) attributes {dimension_semantics = [#tpu.dimension_semantics<parallel>], iteration_bounds = array<i64: 2>, scalar_prefetch = 0 : i64, scratch_operands = 0 : i64, tpu.core_type = #tpu.core_type<tc>, window_params = [{transform_indices = @transform_0, window_bounds = array<i64: 36, 256>}, {pipeline_mode = #tpu.pipeline_mode<synchronous>, transform_indices = @transform_1, window_bounds = array<i64: 8, 36>}, {pipeline_mode = #tpu.pipeline_mode<synchronous>, transform_indices = @transform_2, window_bounds = array<i64: 8, 1>}, {transform_indices = @transform_3, window_bounds = array<i64: 8, 256>}]} {
    %c0 = arith.constant 0 : index
    %c0_0 = arith.constant 0 : index
    %0 = vector.load %arg2[%c0, %c0_0] : memref<8x36xbf16, #tpu.memory_space<vmem>>, vector<8x36xbf16>
    %c0_1 = arith.constant 0 : index
    %c0_2 = arith.constant 0 : index
    %1 = vector.load %arg1[%c0_1, %c0_2] : memref<36x256xbf16, #tpu.memory_space<vmem>>, vector<36x256xbf16>
    %cst = arith.constant dense<0.000000e+00> : vector<8x256xf32>
    %2 = tpu.matmul %0, %1, %cst {dimension_numbers = #tpu.dot_dimension_numbers<[1], [0], [0], [1], [0, 0, 1, 1], [], []>} : vector<8x36xbf16>, vector<36x256xbf16>, vector<8x256xf32> -> vector<8x256xf32>
    %c0_3 = arith.constant 0 : index
    %c0_4 = arith.constant 0 : index
    %3 = vector.load %arg3[%c0_3, %c0_4] : memref<8x1xf32, #tpu.memory_space<vmem>>, vector<8x1xf32>
    %4 = vector.broadcast %3 : vector<8x1xf32> to vector<8x256xf32>
    %5 = arith.addf %2, %4 : vector<8x256xf32>
    %cst_5 = arith.constant 0.000000e+00 : f32
    %6 = vector.broadcast %cst_5 : f32 to vector<8x256xf32>
    %7 = arith.maximumf %5, %6 : vector<8x256xf32>
    %8 = arith.truncf %7 : vector<8x256xf32> to vector<8x256xbf16>
    %c0_6 = arith.constant 0 : index
    %c0_7 = arith.constant 0 : index
    %9 = vector.load %arg4[%c0_6, %c0_7] : memref<8x256xbf16, #tpu.memory_space<vmem>>, vector<8x256xbf16>
    tpu.vector_store %arg4[%c0_6, %c0_7], %8 {strides = array<i32>} : memref<8x256xbf16, #tpu.memory_space<vmem>>, vector<8x256xbf16>,
    return
  }
  func.func @transform_0(%arg0: i32) -> (i32, i32) {
    %c0_i32 = arith.constant 0 : i32
    %c0_i32_0 = arith.constant 0 : i32
    return %c0_i32, %arg0 : i32, i32
  }
  func.func @transform_1(%arg0: i32) -> (i32, i32) {
    %c0_i32 = arith.constant 0 : i32
    %c0_i32_0 = arith.constant 0 : i32
    %c0_i32_1 = arith.constant 0 : i32
    return %c0_i32, %c0_i32_0 : i32, i32
  }
  func.func @transform_2(%arg0: i32) -> (i32, i32) {
    %c0_i32 = arith.constant 0 : i32
    %c0_i32_0 = arith.constant 0 : i32
    %c0_i32_1 = arith.constant 0 : i32
    return %c0_i32, %c0_i32_0 : i32, i32
  }
  func.func @transform_3(%arg0: i32) -> (i32, i32) {
    %c0_i32 = arith.constant 0 : i32
    %c0_i32_0 = arith.constant 0 : i32
    return %c0_i32, %arg0 : i32, i32
  }
}

</mosaic_0001>

<llo_original>
// kernel: tpu_custom_call.1
$region0: #{tpu_custom_call.1}
  #allocation0 [shape = 'u32[]', space=smem, size = 0x4, offset = 0x4, fixed_abs, tag = 'smem constant byte address 0x4 - core index']
  #allocation1 [shape = 'u32[144,128]{1,0:T(1,128)}', space=vmem, size = 0x12000, scoped, tag = 'internal scratch']
  %s0 = inlined_call_operand.hbm [shape: bf16[36,512], index: 0, kind: input, shape index: {}]
  %s1 = inlined_call_operand.vmem [shape: bf16[8,36], index: 1, kind: input, shape index: {}]
  %s2 = inlined_call_operand.vmem [shape: f32[8,1], index: 2, kind: input, shape index: {}]
  %s3 = inlined_call_operand.hbm [shape: bf16[8,512], index: 3, kind: output, shape index: {}]
  %s4 = sld [smem:[#allocation0]]
  $region49: #{tpu_custom_call.1} parent=0
    _
  %s6 = ssub.s32 1, %s4
  %s7 = scalar_select 0, %s6, %s4
  $region1: #{tpu_custom_call.1} parent=0
    #allocation2 [shape = 'u8[40960]{0}', space=vmem, size = 0xa000, scoped, tag = 'input window, operand 0']
    #allocation3 [shape = 's32[2]{0}', space=sflag, size = 0x8, scoped, tag = 'scoped memory for tpu_custom_call.1']
    #allocation4 [shape = 's32[2]{0}', space=sflag, size = 0x8, scoped, tag = 'scoped memory for tpu_custom_call.1']
    #allocation5 [shape = 'u8[8192]{0}', space=vmem, size = 0x2000, scoped, tag = 'output window, operand 0']
    %8 = vsyncpa [#allocation3], 0
    %s9 = scalar_lea.sflag [#allocation3], 1
    %10 = vsyncpa %s9, 0
    %11 = vsyncpa [#allocation4], 0
    %s12 = scalar_lea.sflag [#allocation4], 1
    %13 = vsyncpa %s12, 0
    loop: start=0, step=1, limit=4
    $region2: #{tpu_custom_call.1} parent=1 // loop_pre_header
      _
    $region3: #{tpu_custom_call.1} parent=1 // loop_header
      %s15 = sphi 0, %s19
      %p16 = scmp.ge.s32.totalorder %s15, 4
      %s25 = sphi 0, %s27
      %s28 = sphi 0, %s25
      %s29 = sphi 0, %s28
      %s45 = sphi 0, %s29
      %s49 = sphi 0, %s49
      %s51 = sphi 0, %s49
      %s52 = sphi 0, %s51
      %s66 = sphi 0, %s52
      %s70 = sphi 0, %s70
      %s72 = sphi 0, %s70
      %s73 = sphi 0, %s72
      %s87 = sphi 0, %s73
      %s93 = sphi 0, %s95
      %s96 = sphi 0, %s93
      %s97 = sphi 0, %s96
      %s113 = sphi 0, %s97
    $region4: #{tpu_custom_call.1} parent=1 // loop_header_branch
      %18 = sbr.rel (%p16) target = $region8
    $region5: #{tpu_custom_call.1} parent=1 // loop_body
      %s20 = ssub.s32 %s15, 1
      %s21 = ssub.s32 %s15, 2
      %s22 = sadd.s32 %s15, 1
      %s23 = ssub.s32 %s15, %s22
      %p24 = scmp.eq.s32.totalorder %s23, 0
      %s26 = sadd.s32 %s25, 1
      %s27 = scalar_select %p24, %s25, %s26
      %p30 = pneg %p24
      %p31 = scmp.eq.s32.totalorder %s15, 1
      %p32 = por %p30, %p31
      %p33 = scmp.ne.s32.totalorder %s25, %s28
      %p34 = scmp.eq.s32.totalorder %s15, 0
      %p35 = por %p33, %p34
      %p36 = scmp.ne.s32.totalorder %s25, %s28
      %p37 = scmp.eq.s32.totalorder %s20, 1
      %p38 = por %p36, %p37
      %p39 = scmp.ne.s32.totalorder %s28, %s29
      %p40 = scmp.eq.s32.totalorder %s20, 0
      %p41 = por %p39, %p40
      %p42 = scmp.ne.s32.totalorder %s28, %s29
      %p43 = scmp.eq.s32.totalorder %s21, 1
      %p44 = por %p42, %p43
      %p46 = scmp.ne.s32.totalorder %s29, %s45
      %p47 = scmp.eq.s32.totalorder %s21, 0
      %p48 = por %p46, %p47
      %s50 = sadd.s32 %s49, 1
      %p53 = scmp.eq.s32.totalorder %s15, 1
      %p54 = scmp.ne.s32.totalorder %s49, %s51
      %p55 = scmp.eq.s32.totalorder %s15, 0
      %p56 = por %p54, %p55
      %p57 = scmp.ne.s32.totalorder %s49, %s51
      %p58 = scmp.eq.s32.totalorder %s20, 1
      %p59 = por %p57, %p58
      %p60 = scmp.ne.s32.totalorder %s51, %s52
      %p61 = scmp.eq.s32.totalorder %s20, 0
      %p62 = por %p60, %p61
      %p63 = scmp.ne.s32.totalorder %s51, %s52
      %p64 = scmp.eq.s32.totalorder %s21, 1
      %p65 = por %p63, %p64
      %p67 = scmp.ne.s32.totalorder %s52, %s66
      %p68 = scmp.eq.s32.totalorder %s21, 0
      %p69 = por %p67, %p68
      %s71 = sadd.s32 %s70, 1
      %p74 = scmp.eq.s32.totalorder %s15, 1
      %p75 = scmp.ne.s32.totalorder %s70, %s72
      %p76 = scmp.eq.s32.totalorder %s15, 0
      %p77 = por %p75, %p76
      %p78 = scmp.ne.s32.totalorder %s70, %s72
      %p79 = scmp.eq.s32.totalorder %s20, 1
      %p80 = por %p78, %p79
      %p81 = scmp.ne.s32.totalorder %s72, %s73
      %p82 = scmp.eq.s32.totalorder %s20, 0
      %p83 = por %p81, %p82
      %p84 = scmp.ne.s32.totalorder %s72, %s73
      %p85 = scmp.eq.s32.totalorder %s21, 1
      %p86 = por %p84, %p85
      %p88 = scmp.ne.s32.totalorder %s73, %s87
      %p89 = scmp.eq.s32.totalorder %s21, 0
      %p90 = por %p88, %p89
      %s91 = ssub.s32 %s15, %s22
      %p92 = scmp.eq.s32.totalorder %s91, 0
      %s94 = sadd.s32 %s93, 1
      %s95 = scalar_select %p92, %s93, %s94
      %p98 = pneg %p92
      %p99 = scmp.eq.s32.totalorder %s15, 1
      %p100 = por %p98, %p99
      %p101 = scmp.ne.s32.totalorder %s93, %s96
      %p102 = scmp.eq.s32.totalorder %s15, 0
      %p103 = por %p101, %p102
      %p104 = scmp.ne.s32.totalorder %s93, %s96
      %p105 = scmp.eq.s32.totalorder %s20, 1
      %p106 = por %p104, %p105
      %p107 = scmp.ne.s32.totalorder %s96, %s97
      %p108 = scmp.eq.s32.totalorder %s20, 0
      %p109 = por %p107, %p108
      %p110 = scmp.ne.s32.totalorder %s96, %s97
      %p111 = scmp.eq.s32.totalorder %s21, 1
      %p112 = por %p110, %p111
      %p114 = scmp.ne.s32.totalorder %s97, %s113
      %p115 = scmp.eq.s32.totalorder %s21, 0
      %p116 = por %p114, %p115
      %p117 = scmp.le.s32.totalorder 1, %s15
      %p118 = scmp.lt.s32.totalorder %s15, 3
      %p119 = pnand %p117, %p118
      %p120 = pneg %p119
      // Predicated region
      $region9: #{tpu_custom_call.1} parent=5 // pred_check
        _
      $region10: #{tpu_custom_call.1} parent=5 // pred_check_branch
        %122 = sbr.rel (%p119) target = $region12
      $region11: #{tpu_custom_call.1} parent=5 // pred_region
        %s123 = ssub.s32 %s15, 1
        // Predicated region
        $region13: #{tpu_custom_call.1} parent=11 // pred_check
          %p124 = pneg %p62
        $region14: #{tpu_custom_call.1} parent=11 // pred_check_branch
          %126 = sbr.rel (%p124) target = $region16
        $region15: #{tpu_custom_call.1} parent=11 // pred_region
          _
        $region16: #{tpu_custom_call.1} parent=11 // pred_fallthru
          _
        // Predicated region
        $region17: #{tpu_custom_call.1} parent=11 // pred_check
          %p127 = pneg %p83
        $region18: #{tpu_custom_call.1} parent=11 // pred_check_branch
          %129 = sbr.rel (%p127) target = $region20
        $region19: #{tpu_custom_call.1} parent=11 // pred_region
          _
        $region20: #{tpu_custom_call.1} parent=11 // pred_fallthru
          _
      $region12: #{tpu_custom_call.1} parent=5 // pred_fallthru
        _
      %p130 = scmp.lt.s32.totalorder %s15, 2
      // Predicated region
      $region21: #{tpu_custom_call.1} parent=5 // pred_check
        %p131 = pneg %p130
      $region22: #{tpu_custom_call.1} parent=5 // pred_check_branch
        %133 = sbr.rel (%p131) target = $region24
      $region23: #{tpu_custom_call.1} parent=5 // pred_region
        // Predicated region
        $region25: #{tpu_custom_call.1} parent=23 // pred_check
          %p134 = pneg %p35
        $region26: #{tpu_custom_call.1} parent=23 // pred_check_branch
          %136 = sbr.rel (%p134) target = $region28
        $region27: #{tpu_custom_call.1} parent=23 // pred_region
          %s137 = sand.u32 %s25, 1
          %s138 = scalar_lea.sflag [#allocation3], %s137
          %s139 = sand.u32 %s25, 1
          %s140 = smul.addr %s139, 40
          %s141 = scalar_lea.vmem [#allocation2], %s140
          %s142 = smul.u32 2, %s15
          %s144 = ssub.s32 640, 640
          %145 = vsyncadd %s138, %s144
          %s146 = smul.addr %s142, 64
          %s147 = scalar_lea.hbm %s0, %s146
          %s148 = sshll.u32 %s141, 4
          %s149 = int_to_ptr.vmem [resolvable:$true] %s148
          %154 = dma.hbm_to_vmem [thread:$0]  %s147, 640, %s149, %s138, 256, 128, 8
        $region28: #{tpu_custom_call.1} parent=23 // pred_fallthru
          _
      $region24: #{tpu_custom_call.1} parent=5 // pred_fallthru
        _
      %p155 = scmp.le.s32.totalorder 1, %s15
      %p156 = scmp.lt.s32.totalorder %s15, 3
      %p157 = pnand %p155, %p156
      %p158 = pneg %p157
      // Predicated region
      $region29: #{tpu_custom_call.1} parent=5 // pred_check
        _
      $region30: #{tpu_custom_call.1} parent=5 // pred_check_branch
        %160 = sbr.rel (%p157) target = $region32
      $region31: #{tpu_custom_call.1} parent=5 // pred_region
        %s161 = ssub.s32 %s15, 1
        %s162 = sand.u32 %s28, 1
        %s163 = scalar_lea.sflag [#allocation3], %s162
        %s164 = sand.u32 %s28, 1
        %s165 = smul.addr %s164, 40
        %s166 = scalar_lea.vmem [#allocation2], %s165
        // Predicated region
        $region33: #{tpu_custom_call.1} parent=31 // pred_check
          %p167 = pneg %p41
        $region34: #{tpu_custom_call.1} parent=31 // pred_check_branch
          %169 = sbr.rel (%p167) target = $region36
        $region35: #{tpu_custom_call.1} parent=31 // pred_region
          %170 = dma.done %s163, 640
        $region36: #{tpu_custom_call.1} parent=31 // pred_fallthru
          _
        %s171 = sand.u32 %s28, 1
        %s172 = scalar_lea.sflag [#allocation3], %s171
        %s173 = sand.u32 %s28, 1
        %s174 = smul.addr %s173, 40
        %s175 = scalar_lea.vmem [#allocation2], %s174
        %p176 = pneg %p41
        %p177 = pneg %p38
        %p178 = pneg %p62
        %p179 = pneg %p59
        %p180 = pneg %p83
        %p181 = pneg %p80
        %p182 = pneg %p109
        %p183 = pneg %p106
        %s184 = sand.u32 %s96, 1
        %s185 = scalar_lea.sflag [#allocation4], %s184
        %s186 = sand.u32 %s96, 1
        %s187 = smul.addr %s186, 8
        %s188 = scalar_lea.vmem [#allocation5], %s187
        %s189 = smul.u32 2, %s20
        %s190 = smul.u32 2, %s20
        %v192 = vld [vmem:[%s1] sm:$0xf]
        %v193 = vld [vmem:[%s166] sm:$0xff]
        %v194 = vld [vmem:[%s166 + $0x8] sm:$0xff]
        %v195 = vld [vmem:[%s166 + $0x10] sm:$0xff]
        %v196 = vld [vmem:[%s166 + $0x18] sm:$0xff]
        %v197 = vld [vmem:[%s166 + $0x20] sm:$0x33]
        %v198 = vld [vmem:[%s2] sm:$0xff]
        %200 = vset.pattern.permute.xlu0 0
        %201 = vperm.xlu0 %200, %v198
        %v202 = vpop.permute.xlu0 %201
        %v209 = vunpack.c.l.b16 %v193
        %v210 = vunpack.c.h.b16 %v193
        %v211 = vunpack.c.l.b16 %v194
        %v212 = vunpack.c.h.b16 %v194
        %v213 = vunpack.c.l.b16 %v195
        %v214 = vunpack.c.h.b16 %v195
        %v215 = vunpack.c.l.b16 %v196
        %v216 = vunpack.c.h.b16 %v196
        %v217 = vunpack.c.l.b16 %v197
        %v218 = vunpack.c.h.b16 %v197
        %v219 = vpack.c.b16 %v211, %v209
        %v220 = vpack.c.b16 %v212, %v210
        %v221 = vpack.c.b16 %v215, %v213
        %v222 = vpack.c.b16 %v216, %v214
        %v223 = vpack.c.b16 %v217, %v217
        %v224 = vpack.c.b16 %v218, %v218
        %vm229 = vcmask 293888
        %v231 = vsel %vm229, %v192, 0
        %vm233 = vcmask 1041408
        %v235 = vsel %vm233, %v223, 0
        %v238 = vsel %vm233, %v224, 0
        %240 = vmatprep.subr.bf16.mxu0 0
        %241 = vmatpush1.bf16.msra.mxu0 0
        %242 = vmatprep.subr.bf16.mxu0 0
        %243 = vmatpush1.bf16.msra.mxu0 0
        %244 = vmatprep.subr.bf16.mxu0 0
        %245 = vmatpush1.bf16.msra.mxu0 0
        %246 = vmatprep.subr.bf16.mxu0 0
        %247 = vmatpush1.bf16.msra.mxu0 0
        %248 = vmatprep.subr.bf16.mxu0 0
        %249 = vmatpush1.bf16.msra.mxu0 0
        %250 = vmatprep.subr.bf16.mxu0 %v238
        %251 = vmatpush1.bf16.msra.mxu0 %v235
        %252 = vmatprep.subr.bf16.mxu0 %v222
        %253 = vmatpush1.bf16.msra.mxu0 %v221
        %254 = vmatprep.subr.bf16.mxu0 %v220
        %255 = vmatpush1.bf16.msra.mxu0 %v219
        %256 = vmatprep.subr.bf16.mxu0 0
        %257 = vmatpush2.bf16.msra.mxu0 0
        %258 = vmatprep.subr.bf16.mxu0 0
        %259 = vmatpush2.bf16.msra.mxu0 0
        %260 = vmatprep.subr.bf16.mxu0 0
        %261 = vmatpush2.bf16.msra.mxu0 0
        %262 = vmatprep.subr.bf16.mxu0 0
        %263 = vmatpush2.bf16.msra.mxu0 0
        %264 = vmatprep.subr.bf16.mxu0 0
        %265 = vmatpush2.bf16.msra.mxu0 0
        %266 = vmatprep.subr.bf16.mxu0 0
        %267 = vmatpush2.bf16.msra.mxu0 0
        %268 = vmatprep.subr.bf16.mxu0 0
        %269 = vmatpush2.bf16.msra.mxu0 0
        %270 = vmatprep.subr.bf16.mxu0 0
        %271 = vmatpush2.bf16.msra.mxu0 0
        %272 = vmatprep.mubr.bf16.mxu0 0
        %273 = vmatmul.mubr.bf16.gmra.mxu0 %v231
        %v274 = vpop.f32.mrf.mxu0
        %v275 = vadd.f32 %v202, %v274
        %v276 = vpop.f32.mrf.mxu0
        %v277 = vadd.f32 %v202, %v276
        %v278 = vpop.f32.mrf.mxu0
        %v279 = vpop.f32.mrf.mxu0
        %280 = vdwg.mxu0
        %v281 = vmax.f32 %v275, 0.0
        %v282 = vmax.f32 %v277, 0.0
        %v283 = vpack.c.bf16 %v281, %v281
        %v284 = vpack.c.bf16 %v282, %v282
        %v287 = vunpack.c.l.b16 %v283
        %v288 = vunpack.c.l.b16 %v284
        %v289 = vpack.c.b16 %v288, %v287
        %291 = vst [vmem:[%s188] sm:$0xff] %v289
        %s292 = sand.u32 %s96, 1
        %s293 = scalar_lea.sflag [#allocation4], %s292
        %s294 = sand.u32 %s96, 1
        %s295 = smul.addr %s294, 8
        %s296 = scalar_lea.vmem [#allocation5], %s295
        // Predicated region
        $region37: #{tpu_custom_call.1} parent=31 // pred_check
          %p297 = pneg %p106
        $region38: #{tpu_custom_call.1} parent=31 // pred_check_branch
          %299 = sbr.rel (%p297) target = $region40
        $region39: #{tpu_custom_call.1} parent=31 // pred_region
          %s300 = smul.u32 2, %s20
          %s302 = ssub.s32 128, 128
          %303 = vsyncadd %s293, %s302
          %s304 = smul.addr %s300, 64
          %s305 = scalar_lea.hbm %s3, %s304
          %s307 = sshll.u32 %s296, 4
          %s308 = int_to_ptr.vmem [resolvable:$true] %s307
          %310 = dma.vmem_to_hbm [thread:$0]  %s308, 128, %s305, %s293
        $region40: #{tpu_custom_call.1} parent=31 // pred_fallthru
          _
      $region32: #{tpu_custom_call.1} parent=5 // pred_fallthru
        _
      %p311 = scmp.le.s32.totalorder 2, %s15
      // Predicated region
      $region41: #{tpu_custom_call.1} parent=5 // pred_check
        %p312 = pneg %p311
      $region42: #{tpu_custom_call.1} parent=5 // pred_check_branch
        %314 = sbr.rel (%p312) target = $region44
      $region43: #{tpu_custom_call.1} parent=5 // pred_region
        %s315 = ssub.s32 %s15, 2
        // Predicated region
        $region45: #{tpu_custom_call.1} parent=43 // pred_check
          %p316 = pneg %p112
        $region46: #{tpu_custom_call.1} parent=43 // pred_check_branch
          %318 = sbr.rel (%p316) target = $region48
        $region47: #{tpu_custom_call.1} parent=43 // pred_region
          %s319 = sand.u32 %s97, 1
          %s320 = scalar_lea.sflag [#allocation4], %s319
          %s321 = sand.u32 %s97, 1
          %s322 = smul.addr %s321, 8
          %s323 = scalar_lea.vmem [#allocation5], %s322
          %324 = dma.done %s320, 128
        $region48: #{tpu_custom_call.1} parent=43 // pred_fallthru
          _
      $region44: #{tpu_custom_call.1} parent=5 // pred_fallthru
        _
    $region6: #{tpu_custom_call.1} parent=1 // loop_footer
      %s19 = sadd.s32 1, %s15
    $region7: #{tpu_custom_call.1} parent=1 // loop_footer_branch
      %14 = sbr.rel target = $region3
    $region8: #{tpu_custom_call.1} parent=1 // loop_exit
      _
    %325 = vsyncpa [#allocation3], 1
    %s326 = scalar_lea.sflag [#allocation3], 1
    %327 = vsyncpa %s326, 1
    %328 = vsyncpa [#allocation4], 1
    %s329 = scalar_lea.sflag [#allocation4], 1
    %330 = vsyncpa %s329, 1

</llo_original>
